<compile_context>
chip_gen: v6e
topology: v6e:2x2x1
jax: 0.10.0
libtpu: 0.0.40
codegen_flags: <defaults>
</compile_context>

<pallas_src>
import jax
import jax.numpy as jnp
from jax.experimental import pallas as pl
from jax.experimental.pallas import tpu as pltpu


def _round_up(x, m):
    return ((x + m - 1) // m) * m


def _cdiv(a, b):
    return -(-a // b)


def _critic_kernel(x_ref, w1_ref, b1_ref, w2_ref, b2_ref, w3_ref, b3_ref, o_ref):
    # Input cast (if any) happens in-kernel; it rides in VALU slack.
    x = x_ref[...].astype(w1_ref.dtype)
    # layer1 + ReLU: MXU matmul, f32 accumulate, f32 bias/ReLU epilogue.
    h1 = jnp.dot(x, w1_ref[...], preferred_element_type=jnp.float32)
    h1 = jnp.maximum(h1 + b1_ref[...], 0.0)
    # layer2 + ReLU.
    h2 = jnp.dot(h1.astype(w2_ref.dtype), w2_ref[...],
                 preferred_element_type=jnp.float32)
    h2 = jnp.maximum(h2 + b2_ref[...], 0.0)
    # layer3: single output column (no lane padding -> minimal HBM writeback).
    out = jnp.dot(h2.astype(w3_ref.dtype), w3_ref[...],
                  preferred_element_type=jnp.float32)
    o_ref[...] = (out + b3_ref[...]).astype(o_ref.dtype)


def prepare_critic_params(params, compute_dtype=jnp.float32):
    """One-time packing of the Critic parameters for the Pallas kernel.

    Pads w1's input dimension up to a multiple of 8 (exact: zero rows
    contribute nothing) and casts weights to `compute_dtype`.  Biases are kept
    in float32 for the f32 epilogue.  Call once at init, reuse every step.
    """
    f32 = jnp.float32
    s = params["w1"].shape[0]
    s_pad = _round_up(s, 8)
    w1 = params["w1"]
    if s_pad != s:
        w1 = jnp.pad(w1, ((0, s_pad - s), (0, 0)))
    return {
        "w1": w1.astype(compute_dtype),                       # (S_pad, 128)
        "b1": params["b1"].reshape(1, -1).astype(f32),        # (1, 128)
        "w2": params["w2"].astype(compute_dtype),             # (128, 64)
        "b2": params["b2"].reshape(1, -1).astype(f32),        # (1, 64)
        "w3": params["w3"].astype(compute_dtype),             # (64, 1)
        "b3": params["b3"].reshape(1, -1).astype(f32),        # (1, 1)
    }


def critic_forward(state, prep, *, block_batch=1024):
    """Critic forward pass.

    state: [batch, state_dim] float32.
    prep:  output of prepare_critic_params().
    Returns [batch, 1] float32.

    block_batch controls the maximum batch-tile size; with the default, all
    typical RL batches run as a single grid step (the whole working set is
    well under 2 MiB of VMEM).  Pass a smaller value (e.g. 128/256) only when
    the batch is large enough that splitting across v7x's two TensorCores pays
    for the extra per-step overhead.
    """
    batch, state_dim = state.shape
    s_pad = prep["w1"].shape[0]
    assert state_dim <= s_pad

    # Balanced batch tiles: single step when batch <= block_batch, otherwise
    # ceil-split so no tile is mostly padding.
    n_tiles = max(1, _cdiv(batch, block_batch))
    tb = _round_up(_cdiv(batch, n_tiles), 8)
    b_pad = tb * n_tiles

    x = state
    if b_pad != batch or s_pad != state_dim:
        # Single fused pad (rows to the tile grid, cols to the aligned K).
        x = jnp.pad(x, ((0, b_pad - batch), (0, s_pad - state_dim)))

    resident = lambda i: (0, 0)  # weights/biases stay VMEM-resident across steps

    out = pl.pallas_call(
        _critic_kernel,
        out_shape=jax.ShapeDtypeStruct((b_pad, 1), jnp.float32),
        grid=(n_tiles,),
        in_specs=[
            pl.BlockSpec((tb, s_pad), lambda i: (i, 0)),
            pl.BlockSpec(prep["w1"].shape, resident),
            pl.BlockSpec(prep["b1"].shape, resident),
            pl.BlockSpec(prep["w2"].shape, resident),
            pl.BlockSpec(prep["b2"].shape, resident),
            pl.BlockSpec(prep["w3"].shape, resident),
            pl.BlockSpec(prep["b3"].shape, resident),
        ],
        out_specs=pl.BlockSpec((tb, 1), lambda i: (i, 0)),
        compiler_params=pltpu.CompilerParams(
            dimension_semantics=("parallel",)),
    )(x, prep["w1"], prep["b1"], prep["w2"], prep["b2"],
      prep["w3"], prep["b3"])

    if b_pad != batch:
        out = out[:batch]
    return out


def init_critic_params(key, state_dim):
    """Deterministic init mimicking PyTorch nn.Linear default U(-1/sqrt(fan_in), +1/sqrt(fan_in))."""
    dims = [(state_dim, 128), (128, 64), (64, 1)]
    params = {}
    keys = jax.random.split(key, 2 * len(dims))
    for i, (fan_in, fan_out) in enumerate(dims):
        bound = 1.0 / jnp.sqrt(float(fan_in))
        w = jax.random.uniform(keys[2 * i], (fan_in, fan_out),
                               minval=-bound, maxval=bound, dtype=jnp.float32)
        b = jax.random.uniform(keys[2 * i + 1], (1, fan_out),
                               minval=-bound, maxval=bound, dtype=jnp.float32)
        params[f"w{i + 1}"] = w
        params[f"b{i + 1}"] = b
    return params


def critic_reference(state, params):
    """Plain-JAX f32 reference for correctness checking."""
    h1 = jnp.maximum(state @ params["w1"] + params["b1"], 0.0)
    h2 = jnp.maximum(h1 @ params["w2"] + params["b2"], 0.0)
    return h2 @ params["w3"] + params["b3"]


if __name__ == "__main__":
    key = jax.random.PRNGKey(0)
    k_param, k_state1, k_state2 = jax.random.split(key, 3)

    state_dim = 4  # inverted-pendulum-style observation
    params = init_critic_params(k_param, state_dim)

    # One-time param packing (hoisted out of the per-call path).
    prep_f32 = prepare_critic_params(params, compute_dtype=jnp.float32)
    prep_bf16 = prepare_critic_params(params, compute_dtype=jnp.bfloat16)

    # Small batch (matches original RL usage) -- single grid step, no row pad.
    state_small = jax.random.normal(k_state1, (8, state_dim), dtype=jnp.float32)
    # Larger batch, not a multiple of 8 -- exercises the tail padding.
    state_big = jax.random.normal(k_state2, (300, state_dim), dtype=jnp.float32)

    for state in (state_small, state_big):
        ref = critic_reference(state, params)

        out_f32 = jax.block_until_ready(critic_forward(state, prep_f32))
        assert out_f32.shape == (state.shape[0], 1), out_f32.shape
        assert jnp.allclose(out_f32, ref, atol=1e-4, rtol=1e-4), (out_f32, ref)

        out_bf16 = jax.block_until_ready(critic_forward(state, prep_bf16))
        assert out_bf16.shape == (state.shape[0], 1), out_bf16.shape
        assert jnp.allclose(out_bf16, ref, atol=3e-2, rtol=3e-2), (out_bf16, ref)

    # Multi-step grid path (resident weights across steps, balanced tiles).
    ref_big = critic_reference(state_big, params)
    out_mt = jax.block_until_ready(
        critic_forward(state_big, prep_f32, block_batch=128))
    assert out_mt.shape == (300, 1), out_mt.shape
    assert jnp.allclose(out_mt, ref_big, atol=1e-4, rtol=1e-4), (out_mt, ref_big)

    print("KERNEL_OK")
</pallas_src>

<mosaic_0001>
module attributes {stable_mosaic.version = 11 : i64} {
  func.func @_critic_kernel(%arg0: i32, %arg1: memref<8x8xf32, #tpu.memory_space<vmem>>, %arg2: memref<8x128xf32, #tpu.memory_space<vmem>>, %arg3: memref<1x128xf32, #tpu.memory_space<vmem>>, %arg4: memref<128x64xf32, #tpu.memory_space<vmem>>, %arg5: memref<1x64xf32, #tpu.memory_space<vmem>>, %arg6: memref<64x1xf32, #tpu.memory_space<vmem>>, %arg7: memref<1x1xf32, #tpu.memory_space<vmem>>, %arg8: memref<8x1xf32, #tpu.memory_space<vmem>>) attributes {dimension_semantics = [#tpu.dimension_semantics<parallel>], iteration_bounds = array<i64: 1>, scalar_prefetch = 0 : i64, scratch_operands = 0 : i64, tpu.core_type = #tpu.core_type<tc>, window_params = [{transform_indices = @transform_0, window_bounds = array<i64: 8, 8>}, {pipeline_mode = #tpu.pipeline_mode<synchronous>, transform_indices = @transform_1, window_bounds = array<i64: 8, 128>}, {pipeline_mode = #tpu.pipeline_mode<synchronous>, transform_indices = @transform_2, window_bounds = array<i64: 1, 128>}, {pipeline_mode = #tpu.pipeline_mode<synchronous>, transform_indices = @transform_3, window_bounds = array<i64: 128, 64>}, {pipeline_mode = #tpu.pipeline_mode<synchronous>, transform_indices = @transform_4, window_bounds = array<i64: 1, 64>}, {pipeline_mode = #tpu.pipeline_mode<synchronous>, transform_indices = @transform_5, window_bounds = array<i64: 64, 1>}, {pipeline_mode = #tpu.pipeline_mode<synchronous>, transform_indices = @transform_6, window_bounds = array<i64: 1, 1>}, {transform_indices = @transform_7, window_bounds = array<i64: 8, 1>}]} {
    %c0 = arith.constant 0 : index
    %c0_0 = arith.constant 0 : index
    %0 = vector.load %arg1[%c0, %c0_0] : memref<8x8xf32, #tpu.memory_space<vmem>>, vector<8x8xf32>
    %c0_1 = arith.constant 0 : index
    %c0_2 = arith.constant 0 : index
    %1 = vector.load %arg2[%c0_1, %c0_2] : memref<8x128xf32, #tpu.memory_space<vmem>>, vector<8x128xf32>
    %cst = arith.constant dense<0.000000e+00> : vector<8x128xf32>
    %2 = tpu.matmul %0, %1, %cst {dimension_numbers = #tpu.dot_dimension_numbers<[1], [0], [0], [1], [0, 0, 1, 1], [], []>} : vector<8x8xf32>, vector<8x128xf32>, vector<8x128xf32> -> vector<8x128xf32>
    %c0_3 = arith.constant 0 : index
    %c0_4 = arith.constant 0 : index
    %3 = vector.load %arg3[%c0_3, %c0_4] : memref<1x128xf32, #tpu.memory_space<vmem>>, vector<1x128xf32>
    %4 = vector.broadcast %3 : vector<1x128xf32> to vector<8x128xf32>
    %5 = arith.addf %2, %4 : vector<8x128xf32>
    %cst_5 = arith.constant 0.000000e+00 : f32
    %6 = vector.broadcast %cst_5 : f32 to vector<8x128xf32>
    %7 = arith.maximumf %5, %6 : vector<8x128xf32>
    %c0_6 = arith.constant 0 : index
    %c0_7 = arith.constant 0 : index
    %8 = vector.load %arg4[%c0_6, %c0_7] : memref<128x64xf32, #tpu.memory_space<vmem>>, vector<128x64xf32>
    %cst_8 = arith.constant dense<0.000000e+00> : vector<8x64xf32>
    %9 = tpu.matmul %7, %8, %cst_8 {dimension_numbers = #tpu.dot_dimension_numbers<[1], [0], [0], [1], [0, 0, 1, 1], [], []>} : vector<8x128xf32>, vector<128x64xf32>, vector<8x64xf32> -> vector<8x64xf32>
    %c0_9 = arith.constant 0 : index
    %c0_10 = arith.constant 0 : index
    %10 = vector.load %arg5[%c0_9, %c0_10] : memref<1x64xf32, #tpu.memory_space<vmem>>, vector<1x64xf32>
    %11 = vector.broadcast %10 : vector<1x64xf32> to vector<8x64xf32>
    %12 = arith.addf %9, %11 : vector<8x64xf32>
    %cst_11 = arith.constant 0.000000e+00 : f32
    %13 = vector.broadcast %cst_11 : f32 to vector<8x64xf32>
    %14 = arith.maximumf %12, %13 : vector<8x64xf32>
    %c0_12 = arith.constant 0 : index
    %c0_13 = arith.constant 0 : index
    %15 = vector.load %arg6[%c0_12, %c0_13] : memref<64x1xf32, #tpu.memory_space<vmem>>, vector<64x1xf32>
    %cst_14 = arith.constant dense<0.000000e+00> : vector<8x1xf32>
    %16 = tpu.matmul %14, %15, %cst_14 {dimension_numbers = #tpu.dot_dimension_numbers<[1], [0], [0], [1], [0, 0, 1, 1], [], []>} : vector<8x64xf32>, vector<64x1xf32>, vector<8x1xf32> -> vector<8x1xf32>
    %c0_15 = arith.constant 0 : index
    %c0_16 = arith.constant 0 : index
    %17 = vector.load %arg7[%c0_15, %c0_16] : memref<1x1xf32, #tpu.memory_space<vmem>>, vector<1x1xf32>
    %18 = vector.broadcast %17 : vector<1x1xf32> to vector<8x1xf32>
    %19 = arith.addf %16, %18 : vector<8x1xf32>
    %c0_17 = arith.constant 0 : index
    %c0_18 = arith.constant 0 : index
    %20 = vector.load %arg8[%c0_17, %c0_18] : memref<8x1xf32, #tpu.memory_space<vmem>>, vector<8x1xf32>
    tpu.vector_store %arg8[%c0_17, %c0_18], %19 {strides = array<i32>} : memref<8x1xf32, #tpu.memory_space<vmem>>, vector<8x1xf32>,
    return
  }
  func.func @transform_0(%arg0: i32) -> (i32, i32) {
    %c0_i32 = arith.constant 0 : i32
    %c0_i32_0 = arith.constant 0 : i32
    return %arg0, %c0_i32 : i32, i32
  }
  func.func @transform_1(%arg0: i32) -> (i32, i32) {
    %c0_i32 = arith.constant 0 : i32
    %c0_i32_0 = arith.constant 0 : i32
    %c0_i32_1 = arith.constant 0 : i32
    return %c0_i32, %c0_i32_0 : i32, i32
  }
  func.func @transform_2(%arg0: i32) -> (i32, i32) {
    %c0_i32 = arith.constant 0 : i32
    %c0_i32_0 = arith.constant 0 : i32
    %c0_i32_1 = arith.constant 0 : i32
    return %c0_i32, %c0_i32_0 : i32, i32
  }
  func.func @transform_3(%arg0: i32) -> (i32, i32) {
    %c0_i32 = arith.constant 0 : i32
    %c0_i32_0 = arith.constant 0 : i32
    %c0_i32_1 = arith.constant 0 : i32
    return %c0_i32, %c0_i32_0 : i32, i32
  }
  func.func @transform_4(%arg0: i32) -> (i32, i32) {
    %c0_i32 = arith.constant 0 : i32
    %c0_i32_0 = arith.constant 0 : i32
    %c0_i32_1 = arith.constant 0 : i32
    return %c0_i32, %c0_i32_0 : i32, i32
  }
  func.func @transform_5(%arg0: i32) -> (i32, i32) {
    %c0_i32 = arith.constant 0 : i32
    %c0_i32_0 = arith.constant 0 : i32
    %c0_i32_1 = arith.constant 0 : i32
    return %c0_i32, %c0_i32_0 : i32, i32
  }
  func.func @transform_6(%arg0: i32) -> (i32, i32) {
    %c0_i32 = arith.constant 0 : i32
    %c0_i32_0 = arith.constant 0 : i32
    %c0_i32_1 = arith.constant 0 : i32
    return %c0_i32, %c0_i32_0 : i32, i32
  }
  func.func @transform_7(%arg0: i32) -> (i32, i32) {
    %c0_i32 = arith.constant 0 : i32
    %c0_i32_0 = arith.constant 0 : i32
    return %arg0, %c0_i32 : i32, i32
  }
}

</mosaic_0001>

<llo_original>
// kernel: tpu_custom_call.1
$region0: #{tpu_custom_call.1}
  #allocation0 [shape = 'u32[]', space=smem, size = 0x4, offset = 0x4, fixed_abs, tag = 'smem constant byte address 0x4 - core index']
  #allocation1 [shape = 'u32[144,128]{1,0:T(1,128)}', space=vmem, size = 0x12000, scoped, tag = 'internal scratch']
  #allocation2 [shape = 'f32[1,1]{1,0:T(1,128)S(1)}', space=vmem, size = 0x200, scoped, tag = 'scoped memory for tpu_custom_call.1']
  %s0 = inlined_call_operand.vmem [shape: f32[8,8], index: 0, kind: input, shape index: {}]
  %s1 = inlined_call_operand.vmem [shape: f32[8,128], index: 1, kind: input, shape index: {}]
  %s2 = inlined_call_operand.vmem [shape: f32[1,128], index: 2, kind: input, shape index: {}]
  %s3 = inlined_call_operand.vmem [shape: f32[128,64], index: 3, kind: input, shape index: {}]
  %s4 = inlined_call_operand.vmem [shape: f32[1,64], index: 4, kind: input, shape index: {}]
  %s5 = inlined_call_operand.vmem [shape: f32[64,1], index: 5, kind: input, shape index: {}]
  %s6 = inlined_call_operand.<no memory space> [shape: f32[1,1], index: 6, kind: input, shape index: {}]
  %s7 = inlined_call_operand.vmem [shape: f32[8,1], index: 7, kind: output, shape index: {}]
  %s8 = sld [smem:[#allocation0]]
  $region38: #{tpu_custom_call.1} parent=0
    _
  %s10 = ssub.s32 1, %s8
  %s11 = scalar_select 0, %s10, %s8
  %v12 = vstv %s6
  %13 = vst [vmem:[#allocation2] sm:$0x1] %v12
  // Predicated region
  $region2: #{tpu_custom_call.1} parent=0 // pred_check
    _
  $region3: #{tpu_custom_call.1} parent=0 // pred_check_branch
    %15 = sbr.rel (0) target = $region5
  $region4: #{tpu_custom_call.1} parent=0 // pred_region
    _
  $region5: #{tpu_custom_call.1} parent=0 // pred_fallthru
    _
  // Predicated region
  $region6: #{tpu_custom_call.1} parent=0 // pred_check
    _
  $region7: #{tpu_custom_call.1} parent=0 // pred_check_branch
    %17 = sbr.rel (0) target = $region9
  $region8: #{tpu_custom_call.1} parent=0 // pred_region
    _
  $region9: #{tpu_custom_call.1} parent=0 // pred_fallthru
    _
  // Predicated region
  $region10: #{tpu_custom_call.1} parent=0 // pred_check
    _
  $region11: #{tpu_custom_call.1} parent=0 // pred_check_branch
    %19 = sbr.rel (0) target = $region13
  $region12: #{tpu_custom_call.1} parent=0 // pred_region
    _
  $region13: #{tpu_custom_call.1} parent=0 // pred_fallthru
    _
  // Predicated region
  $region14: #{tpu_custom_call.1} parent=0 // pred_check
    _
  $region15: #{tpu_custom_call.1} parent=0 // pred_check_branch
    %21 = sbr.rel (0) target = $region17
  $region16: #{tpu_custom_call.1} parent=0 // pred_region
    _
  $region17: #{tpu_custom_call.1} parent=0 // pred_fallthru
    _
  // Predicated region
  $region18: #{tpu_custom_call.1} parent=0 // pred_check
    _
  $region19: #{tpu_custom_call.1} parent=0 // pred_check_branch
    %23 = sbr.rel (0) target = $region21
  $region20: #{tpu_custom_call.1} parent=0 // pred_region
    _
  $region21: #{tpu_custom_call.1} parent=0 // pred_fallthru
    _
  // Predicated region
  $region22: #{tpu_custom_call.1} parent=0 // pred_check
    _
  $region23: #{tpu_custom_call.1} parent=0 // pred_check_branch
    %25 = sbr.rel (0) target = $region25
  $region24: #{tpu_custom_call.1} parent=0 // pred_region
    _
  $region25: #{tpu_custom_call.1} parent=0 // pred_fallthru
    _
  // Predicated region
  $region26: #{tpu_custom_call.1} parent=0 // pred_check
    _
  $region27: #{tpu_custom_call.1} parent=0 // pred_check_branch
    %27 = sbr.rel (0) target = $region29
  $region28: #{tpu_custom_call.1} parent=0 // pred_region
    _
  $region29: #{tpu_custom_call.1} parent=0 // pred_fallthru
    _
  %v28 = vld [vmem:[%s0] sm:$0xff]
  %v29 = vld [vmem:[%s1] sm:$0xff]
  %v30 = vld [vmem:[%s2] sm:$0x1]
  %v32 = vlaneseq
  %v33 = vshrl.u32 %v32, 7
  %v34 = vsub.s32 0, %v33
  %v35 = vrot.slane %v30, %v34
  %vm37 = vcmask 64512
  %v39 = vsel %vm37, %v28, 0
  %41 = vmatprep.subr.mxu0 0.0
  %42 = vmatpush1.msra.mxu0 0.0
  %43 = vmatprep.subr.mxu0 0.0
  %44 = vmatpush1.msra.mxu0 0.0
  %45 = vmatprep.subr.mxu0 0.0
  %46 = vmatpush1.msra.mxu0 0.0
  %47 = vmatprep.subr.mxu0 0.0
  %48 = vmatpush1.msra.mxu0 0.0
  %49 = vmatprep.subr.mxu0 0.0
  %50 = vmatpush1.msra.mxu0 0.0
  %51 = vmatprep.subr.mxu0 0.0
  %52 = vmatpush1.msra.mxu0 0.0
  %53 = vmatprep.subr.mxu0 0.0
  %54 = vmatpush1.msra.mxu0 0.0
  %55 = vmatprep.subr.mxu0 0.0
  %56 = vmatpush1.msra.mxu0 0.0
  %57 = vmatprep.subr.mxu0 0.0
  %58 = vmatpush1.msra.mxu0 0.0
  %59 = vmatprep.subr.mxu0 0.0
  %60 = vmatpush1.msra.mxu0 0.0
  %61 = vmatprep.subr.mxu0 0.0
  %62 = vmatpush1.msra.mxu0 0.0
  %63 = vmatprep.subr.mxu0 0.0
  %64 = vmatpush1.msra.mxu0 0.0
  %65 = vmatprep.subr.mxu0 0.0
  %66 = vmatpush1.msra.mxu0 0.0
  %67 = vmatprep.subr.mxu0 0.0
  %68 = vmatpush1.msra.mxu0 0.0
  %69 = vmatprep.subr.mxu0 0.0
  %70 = vmatpush1.msra.mxu0 0.0
  %71 = vmatprep.subr.mxu0 0.0
  %72 = vmatpush1.msra.mxu0 %v29
  %73 = vmatprep.subr.mxu0 0.0
  %74 = vmatpush2.msra.mxu0 0.0
  %75 = vmatprep.subr.mxu0 0.0
  %76 = vmatpush2.msra.mxu0 0.0
  %77 = vmatprep.subr.mxu0 0.0
  %78 = vmatpush2.msra.mxu0 0.0
  %79 = vmatprep.subr.mxu0 0.0
  %80 = vmatpush2.msra.mxu0 0.0
  %81 = vmatprep.subr.mxu0 0.0
  %82 = vmatpush2.msra.mxu0 0.0
  %83 = vmatprep.subr.mxu0 0.0
  %84 = vmatpush2.msra.mxu0 0.0
  %85 = vmatprep.subr.mxu0 0.0
  %86 = vmatpush2.msra.mxu0 0.0
  %87 = vmatprep.subr.mxu0 0.0
  %88 = vmatpush2.msra.mxu0 0.0
  %89 = vmatprep.subr.mxu0 0.0
  %90 = vmatpush2.msra.mxu0 0.0
  %91 = vmatprep.subr.mxu0 0.0
  %92 = vmatpush2.msra.mxu0 0.0
  %93 = vmatprep.subr.mxu0 0.0
  %94 = vmatpush2.msra.mxu0 0.0
  %95 = vmatprep.subr.mxu0 0.0
  %96 = vmatpush2.msra.mxu0 0.0
  %97 = vmatprep.subr.mxu0 0.0
  %98 = vmatpush2.msra.mxu0 0.0
  %99 = vmatprep.subr.mxu0 0.0
  %100 = vmatpush2.msra.mxu0 0.0
  %101 = vmatprep.subr.mxu0 0.0
  %102 = vmatpush2.msra.mxu0 0.0
  %103 = vmatprep.subr.mxu0 0.0
  %104 = vmatpush2.msra.mxu0 0.0
  %105 = vmatprep.mubr.f32.mxu0 0.0
  %106 = vmatmul.mubr.f32.gmra.mxu0 %v39
  %v107 = vpop.f32.mrf.mxu0
  %v108 = vadd.f32 %v35, %v107
  %v109 = vpop.f32.mrf.mxu0
  %110 = vdwg.mxu0
  %v111 = vmax.f32 %v108, 0.0
  %v112 = vld [vmem:[%s3] sm:$0xff]
  %v113 = vld [vmem:[%s3 + $0x8] sm:$0xff]
  %v114 = vld [vmem:[%s3 + $0x10] sm:$0xff]
  %v115 = vld [vmem:[%s3 + $0x18] sm:$0xff]
  %v116 = vld [vmem:[%s3 + $0x20] sm:$0xff]
  %v117 = vld [vmem:[%s3 + $0x28] sm:$0xff]
  %v118 = vld [vmem:[%s3 + $0x30] sm:$0xff]
  %v119 = vld [vmem:[%s3 + $0x38] sm:$0xff]
  %v120 = vld [vmem:[%s3 + $0x40] sm:$0xff]
  %v121 = vld [vmem:[%s3 + $0x48] sm:$0xff]
  %v122 = vld [vmem:[%s3 + $0x50] sm:$0xff]
  %v123 = vld [vmem:[%s3 + $0x58] sm:$0xff]
  %v124 = vld [vmem:[%s3 + $0x60] sm:$0xff]
  %v125 = vld [vmem:[%s3 + $0x68] sm:$0xff]
  %v126 = vld [vmem:[%s3 + $0x70] sm:$0xff]
  %v127 = vld [vmem:[%s3 + $0x78] sm:$0xff]
  %v128 = vld [vmem:[%s4] sm:$0x1]
  %v130 = vlaneseq
  %v131 = vshrl.u32 %v130, 7
  %v132 = vsub.s32 0, %v131
  %v133 = vrot.slane %v128, %v132
  %135 = vmatprep.subr.mxu0 0.0
  %136 = vmatpush1.msra.mxu0 %v127
  %137 = vmatprep.subr.mxu0 0.0
  %138 = vmatpush1.msra.mxu0 %v126
  %139 = vmatprep.subr.mxu0 0.0
  %140 = vmatpush1.msra.mxu0 %v125
  %141 = vmatprep.subr.mxu0 0.0
  %142 = vmatpush1.msra.mxu0 %v124
  %143 = vmatprep.subr.mxu0 0.0
  %144 = vmatpush1.msra.mxu0 %v123
  %145 = vmatprep.subr.mxu0 0.0
  %146 = vmatpush1.msra.mxu0 %v122
  %147 = vmatprep.subr.mxu0 0.0
  %148 = vmatpush1.msra.mxu0 %v121
  %149 = vmatprep.subr.mxu0 0.0
  %150 = vmatpush1.msra.mxu0 %v120
  %151 = vmatprep.subr.mxu0 0.0
  %152 = vmatpush1.msra.mxu0 %v119
  %153 = vmatprep.subr.mxu0 0.0
  %154 = vmatpush1.msra.mxu0 %v118
  %155 = vmatprep.subr.mxu0 0.0
  %156 = vmatpush1.msra.mxu0 %v117
  %157 = vmatprep.subr.mxu0 0.0
  %158 = vmatpush1.msra.mxu0 %v116
  %159 = vmatprep.subr.mxu0 0.0
  %160 = vmatpush1.msra.mxu0 %v115
  %161 = vmatprep.subr.mxu0 0.0
  %162 = vmatpush1.msra.mxu0 %v114
  %163 = vmatprep.subr.mxu0 0.0
  %164 = vmatpush1.msra.mxu0 %v113
  %165 = vmatprep.subr.mxu0 0.0
  %166 = vmatpush1.msra.mxu0 %v112
  %167 = vmatprep.subr.mxu0 0.0
  %168 = vmatpush2.msra.mxu0 0.0
  %169 = vmatprep.subr.mxu0 0.0
  %170 = vmatpush2.msra.mxu0 0.0
  %171 = vmatprep.subr.mxu0 0.0
  %172 = vmatpush2.msra.mxu0 0.0
  %173 = vmatprep.subr.mxu0 0.0
  %174 = vmatpush2.msra.mxu0 0.0
  %175 = vmatprep.subr.mxu0 0.0
  %176 = vmatpush2.msra.mxu0 0.0
  %177 = vmatprep.subr.mxu0 0.0
  %178 = vmatpush2.msra.mxu0 0.0
  %179 = vmatprep.subr.mxu0 0.0
  %180 = vmatpush2.msra.mxu0 0.0
  %181 = vmatprep.subr.mxu0 0.0
  %182 = vmatpush2.msra.mxu0 0.0
  %183 = vmatprep.subr.mxu0 0.0
  %184 = vmatpush2.msra.mxu0 0.0
  %185 = vmatprep.subr.mxu0 0.0
  %186 = vmatpush2.msra.mxu0 0.0
  %187 = vmatprep.subr.mxu0 0.0
  %188 = vmatpush2.msra.mxu0 0.0
  %189 = vmatprep.subr.mxu0 0.0
  %190 = vmatpush2.msra.mxu0 0.0
  %191 = vmatprep.subr.mxu0 0.0
  %192 = vmatpush2.msra.mxu0 0.0
  %193 = vmatprep.subr.mxu0 0.0
  %194 = vmatpush2.msra.mxu0 0.0
  %195 = vmatprep.subr.mxu0 0.0
  %196 = vmatpush2.msra.mxu0 0.0
  %197 = vmatprep.subr.mxu0 0.0
  %198 = vmatpush2.msra.mxu0 0.0
  %199 = vmatprep.mubr.f32.mxu0 0.0
  %200 = vmatmul.mubr.f32.gmra.mxu0 %v111
  %v201 = vpop.f32.mrf.mxu0
  %v202 = vadd.f32 %v133, %v201
  %v203 = vpop.f32.mrf.mxu0
  %204 = vdwg.mxu0
  %v205 = vmax.f32 %v202, 0.0
  %v206 = vld [vmem:[%s5] sm:$0xff]
  %v207 = vld [vmem:[%s5 + $0x8] sm:$0xff]
  %v208 = vld [vmem:[%s5 + $0x10] sm:$0xff]
  %v209 = vld [vmem:[%s5 + $0x18] sm:$0xff]
  %v210 = vld [vmem:[%s5 + $0x20] sm:$0xff]
  %v211 = vld [vmem:[%s5 + $0x28] sm:$0xff]
  %v212 = vld [vmem:[%s5 + $0x30] sm:$0xff]
  %v213 = vld [vmem:[%s5 + $0x38] sm:$0xff]
  %v214 = vld [vmem:[#allocation2] sm:$0x1]
  %v216 = vlaneseq
  %v217 = vshrl.u32 %v216, 7
  %v218 = vsub.s32 0, %v217
  %v219 = vrot.slane %v214, %v218
  %vm221 = vcmask 523264
  %v223 = vsel %vm221, %v205, 0
  %225 = vmatprep.subr.mxu0 0.0
  %226 = vmatpush1.msra.mxu0 0.0
  %227 = vmatprep.subr.mxu0 0.0
  %228 = vmatpush1.msra.mxu0 0.0
  %229 = vmatprep.subr.mxu0 0.0
  %230 = vmatpush1.msra.mxu0 0.0
  %231 = vmatprep.subr.mxu0 0.0
  %232 = vmatpush1.msra.mxu0 0.0
  %233 = vmatprep.subr.mxu0 0.0
  %234 = vmatpush1.msra.mxu0 0.0
  %235 = vmatprep.subr.mxu0 0.0
  %236 = vmatpush1.msra.mxu0 0.0
  %237 = vmatprep.subr.mxu0 0.0
  %238 = vmatpush1.msra.mxu0 0.0
  %239 = vmatprep.subr.mxu0 0.0
  %240 = vmatpush1.msra.mxu0 0.0
  %241 = vmatprep.subr.mxu0 0.0
  %242 = vmatpush1.msra.mxu0 %v213
  %243 = vmatprep.subr.mxu0 0.0
  %244 = vmatpush1.msra.mxu0 %v212
  %245 = vmatprep.subr.mxu0 0.0
  %246 = vmatpush1.msra.mxu0 %v211
  %247 = vmatprep.subr.mxu0 0.0
  %248 = vmatpush1.msra.mxu0 %v210
  %249 = vmatprep.subr.mxu0 0.0
  %250 = vmatpush1.msra.mxu0 %v209
  %251 = vmatprep.subr.mxu0 0.0
  %252 = vmatpush1.msra.mxu0 %v208
  %253 = vmatprep.subr.mxu0 0.0
  %254 = vmatpush1.msra.mxu0 %v207
  %255 = vmatprep.subr.mxu0 0.0
  %256 = vmatpush1.msra.mxu0 %v206
  %257 = vmatprep.subr.mxu0 0.0
  %258 = vmatpush2.msra.mxu0 0.0
  %259 = vmatprep.subr.mxu0 0.0
  %260 = vmatpush2.msra.mxu0 0.0
  %261 = vmatprep.subr.mxu0 0.0
  %262 = vmatpush2.msra.mxu0 0.0
  %263 = vmatprep.subr.mxu0 0.0
  %264 = vmatpush2.msra.mxu0 0.0
  %265 = vmatprep.subr.mxu0 0.0
  %266 = vmatpush2.msra.mxu0 0.0
  %267 = vmatprep.subr.mxu0 0.0
  %268 = vmatpush2.msra.mxu0 0.0
  %269 = vmatprep.subr.mxu0 0.0
  %270 = vmatpush2.msra.mxu0 0.0
  %271 = vmatprep.subr.mxu0 0.0
  %272 = vmatpush2.msra.mxu0 0.0
  %273 = vmatprep.subr.mxu0 0.0
  %274 = vmatpush2.msra.mxu0 0.0
  %275 = vmatprep.subr.mxu0 0.0
  %276 = vmatpush2.msra.mxu0 0.0
  %277 = vmatprep.subr.mxu0 0.0
  %278 = vmatpush2.msra.mxu0 0.0
  %279 = vmatprep.subr.mxu0 0.0
  %280 = vmatpush2.msra.mxu0 0.0
  %281 = vmatprep.subr.mxu0 0.0
  %282 = vmatpush2.msra.mxu0 0.0
  %283 = vmatprep.subr.mxu0 0.0
  %284 = vmatpush2.msra.mxu0 0.0
  %285 = vmatprep.subr.mxu0 0.0
  %286 = vmatpush2.msra.mxu0 0.0
  %287 = vmatprep.subr.mxu0 0.0
  %288 = vmatpush2.msra.mxu0 0.0
  %289 = vmatprep.mubr.f32.mxu0 0.0
  %290 = vmatmul.mubr.f32.gmra.mxu0 %v223
  %v291 = vpop.f32.mrf.mxu0
  %v292 = vadd.f32 %v219, %v291
  %v293 = vpop.f32.mrf.mxu0
  %294 = vdwg.mxu0
  %vm295 = vcmask 7168
  %296 = vst.msk [vmem:[%s7] sm:$0xff] %vm295, %v292
  // Predicated region
  $region30: #{tpu_custom_call.1} parent=0 // pred_check
    _
  $region31: #{tpu_custom_call.1} parent=0 // pred_check_branch
    %298 = sbr.rel (0) target = $region33
  $region32: #{tpu_custom_call.1} parent=0 // pred_region
    _
  $region33: #{tpu_custom_call.1} parent=0 // pred_fallthru
    _
  // Predicated region
  $region34: #{tpu_custom_call.1} parent=0 // pred_check
    _
  $region35: #{tpu_custom_call.1} parent=0 // pred_check_branch
    %300 = sbr.rel (0) target = $region37
  $region36: #{tpu_custom_call.1} parent=0 // pred_region
    _
  $region37: #{tpu_custom_call.1} parent=0 // pred_fallthru
    _

</llo_original>
